<compile_context>
chip_gen: v7x
topology: tpu7x:2x2x1
jax: 0.10.0
libtpu: 0.0.40
codegen_flags: <defaults>
</compile_context>

<pallas_src>
import functools

import jax
import jax.numpy as jnp
import numpy as np
from jax.experimental import pallas as pl
from jax.experimental.pallas import tpu as pltpu


# ---------------------------------------------------------------------------
# Pallas kernels
# ---------------------------------------------------------------------------
def _mm_bias_act_kernel(x_ref, w_ref, b_ref, o_ref, *, relu):
    # y = act(x @ w + bias)        (BN scale already folded into w)
    acc = jnp.dot(x_ref[...], w_ref[...], preferred_element_type=jnp.float32)
    y = acc + b_ref[...]
    if relu:
        y = jnp.maximum(y, 0.0)
    o_ref[...] = y.astype(o_ref.dtype)


def _mm_bias_add_relu_kernel(x_ref, w_ref, b_ref, r_ref, o_ref):
    # y = relu(x @ w + bias + residual)
    acc = jnp.dot(x_ref[...], w_ref[...], preferred_element_type=jnp.float32)
    y = acc + b_ref[...] + r_ref[...].astype(jnp.float32)
    o_ref[...] = jnp.maximum(y, 0.0).astype(o_ref.dtype)


def _conv3x3_bias_relu_kernel(x_ref, w_ref, b_ref, o_ref, *, stride):
    # x_ref: (1, s*s, hq, wq, cin)  bf16, phase-decomposed zero-padded input
    # w_ref: (9*cin, cout)          bf16, BN scale folded in, (kh,kw,cin) rows
    # b_ref: (1, cout)              f32
    # o_ref: (1, ho, wo, cout)
    s = stride
    _, ho, wo, cout = o_ref.shape
    cin = x_ref.shape[-1]
    acc = jnp.zeros((ho * wo, cout), jnp.float32)
    # 9 accumulated shifted matmuls -- avoids a 9x im2col blowup in HBM.
    for kh in range(3):
        for kw in range(3):
            p = (kh % s) * s + (kw % s)          # phase index
            dh, dw = kh // s, kw // s            # offset inside phase
            xs = x_ref[0, p, dh:dh + ho, dw:dw + wo, :]
            wk = w_ref[(kh * 3 + kw) * cin:(kh * 3 + kw + 1) * cin, :]
            acc = acc + jnp.dot(xs.reshape(ho * wo, cin), wk,
                                preferred_element_type=jnp.float32)
    y = jnp.maximum(acc + b_ref[...], 0.0)
    o_ref[...] = y.reshape(1, ho, wo, cout).astype(o_ref.dtype)


# ---------------------------------------------------------------------------
# Wrappers around pallas_call
# ---------------------------------------------------------------------------
def _pick_tm(m):
    # Prefer a tile that divides M exactly (no pad / slice round trips);
    # 256 first so the parallel M axis has >=2 steps for typical sizes.
    for tm in (256, 512, 128, 64, 32, 16, 8):
        if m % tm == 0:
            return tm
    return 128  # ragged fallback: pad rows


def _pick_tn(n):
    if n % 256 == 0:
        return 256
    if n % 128 == 0:
        return 128
    return n  # small channel counts: full width (lane-sparse, demo only)


def _pad_rows(a, m_pad):
    m = a.shape[0]
    if m == m_pad:
        return a
    return jnp.pad(a, ((0, m_pad - m), (0, 0)))


def matmul_bias_act(x2d, w, bias, *, relu, residual=None,
                    out_dtype=jnp.bfloat16):
    """y = act(x2d @ w + bias [+ residual]) -- fused 1x1-conv/BN kernel.

    x2d/w/residual are cast to bf16 for the MXU; accumulation is f32.
    """
    M, K = x2d.shape
    Kw, N = w.shape
    assert K == Kw
    tm = _pick_tm(M)
    tn = _pick_tn(N)
    m_pad = pl.cdiv(M, tm) * tm

    x_p = _pad_rows(x2d.astype(jnp.bfloat16), m_pad)
    w_bf = w.astype(jnp.bfloat16)
    b2d = bias.reshape(1, N).astype(jnp.float32)

    grid = (m_pad // tm, N // tn)
    x_spec = pl.BlockSpec((tm, K), lambda i, j: (i, 0))
    w_spec = pl.BlockSpec((K, tn), lambda i, j: (0, j))
    b_spec = pl.BlockSpec((1, tn), lambda i, j: (0, j))
    o_spec = pl.BlockSpec((tm, tn), lambda i, j: (i, j))
    cparams = pltpu.CompilerParams(
        dimension_semantics=("parallel", "parallel"))

    if residual is None:
        out = pl.pallas_call(
            functools.partial(_mm_bias_act_kernel, relu=relu),
            out_shape=jax.ShapeDtypeStruct((m_pad, N), out_dtype),
            grid_spec=pltpu.PrefetchScalarGridSpec(
                num_scalar_prefetch=0, grid=grid,
                in_specs=[x_spec, w_spec, b_spec], out_specs=o_spec),
            compiler_params=cparams,
        )(x_p, w_bf, b2d)
    else:
        r_p = _pad_rows(residual.astype(jnp.bfloat16), m_pad)
        out = pl.pallas_call(
            _mm_bias_add_relu_kernel,
            out_shape=jax.ShapeDtypeStruct((m_pad, N), out_dtype),
            grid_spec=pltpu.PrefetchScalarGridSpec(
                num_scalar_prefetch=0, grid=grid,
                in_specs=[x_spec, w_spec, b_spec, o_spec], out_specs=o_spec),
            compiler_params=cparams,
        )(x_p, w_bf, b2d, r_p)
    if m_pad != M:
        out = out[:M]
    return out


def conv3x3_bn_relu(x_nhwc, w_oihw, scale, bias, stride):
    """3x3 conv (pad=1, stride) + BN + ReLU, fused in one Pallas kernel."""
    n, h, w, cin = x_nhwc.shape
    cout = w_oihw.shape[0]
    s = stride
    ho = (h + 2 - 3) // s + 1
    wo = (w + 2 - 3) // s + 1
    hq = 2 // s + ho
    wq = 2 // s + wo
    pad_b = max(0, s * hq - (h + 2))
    pad_r = max(0, s * wq - (w + 2))

    xp = jnp.pad(x_nhwc, ((0, 0), (1, 1 + pad_b), (1, 1 + pad_r), (0, 0)))
    # Phase-decompose (for stride>1) so the kernel only needs contiguous
    # (unstrided) slices; for stride==1 this is just the padded input.
    phases = [xp[:, a::s, b::s, :][:, :hq, :wq, :]
              for a in range(s) for b in range(s)]
    x_ph = jnp.stack(phases, axis=1).astype(jnp.bfloat16)  # (n, s*s, hq, wq, cin)

    # (Cout, Cin, 3, 3) -> (9*Cin, Cout), BN scale folded into weights.
    w2 = (jnp.transpose(w_oihw, (2, 3, 1, 0)).reshape(9 * cin, cout)
          * scale.reshape(1, cout)).astype(jnp.bfloat16)
    b2 = bias.reshape(1, cout).astype(jnp.float32)

    out = pl.pallas_call(
        functools.partial(_conv3x3_bias_relu_kernel, stride=s),
        out_shape=jax.ShapeDtypeStruct((n, ho, wo, cout), jnp.bfloat16),
        grid_spec=pltpu.PrefetchScalarGridSpec(
            num_scalar_prefetch=0, grid=(n,),
            in_specs=[
                pl.BlockSpec((1, s * s, hq, wq, cin),
                             lambda b: (b, 0, 0, 0, 0)),
                pl.BlockSpec((9 * cin, cout), lambda b: (0, 0)),
                pl.BlockSpec((1, cout), lambda b: (0, 0)),
            ],
            out_specs=pl.BlockSpec((1, ho, wo, cout), lambda b: (b, 0, 0, 0)),
        ),
        compiler_params=pltpu.CompilerParams(
            dimension_semantics=("parallel",)),
    )(x_ph, w2, b2)
    return out, ho, wo


# ---------------------------------------------------------------------------
# BN folding / weight reshapes
# ---------------------------------------------------------------------------
def _fold_bn(gamma, beta, mean, var, eps=1e-5):
    scale = gamma / jnp.sqrt(var + eps)
    bias = beta - mean * scale
    return scale, bias


def _w1x1(w_oihw):  # (Cout, Cin, 1, 1) -> (Cin, Cout)
    return jnp.transpose(w_oihw[:, :, 0, 0], (1, 0))


# ---------------------------------------------------------------------------
# Bottleneck parameter construction + forward
# ---------------------------------------------------------------------------
EXPANSION = 4


def init_bottleneck_params(key, in_planes, planes, stride):
    keys = iter(jax.random.split(key, 24))   # 4 convs + 4 BNs * 4 = 20 keys max

    def conv_w(shape):
        return 0.1 * jax.random.normal(next(keys), shape, jnp.float32)

    def bn_params(c):
        gamma = 1.0 + 0.1 * jax.random.normal(next(keys), (c,), jnp.float32)
        beta = 0.1 * jax.random.normal(next(keys), (c,), jnp.float32)
        mean = 0.05 * jax.random.normal(next(keys), (c,), jnp.float32)
        var = 0.5 + jax.random.uniform(next(keys), (c,), jnp.float32)
        return gamma, beta, mean, var

    out_planes = planes * EXPANSION
    p = {
        "conv1_w": conv_w((planes, in_planes, 1, 1)),
        "bn1": bn_params(planes),
        "conv2_w": conv_w((planes, planes, 3, 3)),
        "bn2": bn_params(planes),
        "conv3_w": conv_w((out_planes, planes, 1, 1)),
        "bn3": bn_params(out_planes),
        "stride": stride,
        "in_planes": in_planes,
        "planes": planes,
    }
    p["has_shortcut"] = (stride != 1) or (in_planes != out_planes)
    if p["has_shortcut"]:
        p["sc_conv_w"] = conv_w((out_planes, in_planes, 1, 1))
        p["sc_bn"] = bn_params(out_planes)
    return p


def bottleneck_forward(params, x_nchw):
    """Forward pass of the Bottleneck block.  Input/output are NCHW (PyTorch)."""
    stride = params["stride"]
    planes = params["planes"]
    out_planes = planes * EXPANSION

    x = jnp.transpose(x_nchw, (0, 2, 3, 1)).astype(jnp.float32)  # NCHW -> NHWC
    n, h, w, cin = x.shape

    # --- conv1 (1x1) + bn1 + relu ----------------------------------------
    s1, b1 = _fold_bn(*params["bn1"])
    w1 = _w1x1(params["conv1_w"]) * s1.reshape(1, -1)
    o = matmul_bias_act(x.reshape(n * h * w, cin), w1, b1, relu=True)
    o = o.reshape(n, h, w, planes)

    # --- conv2 (3x3, stride, pad=1) + bn2 + relu (fused, no im2col) -------
    s2, b2 = _fold_bn(*params["bn2"])
    o, ho, wo = conv3x3_bn_relu(o, params["conv2_w"], s2, b2, stride)
    o2d = o.reshape(n * ho * wo, planes)

    # --- shortcut ----------------------------------------------------------
    if params["has_shortcut"]:
        x_s = x[:, ::stride, ::stride, :].reshape(n * ho * wo, cin)
        ss, bs = _fold_bn(*params["sc_bn"])
        ws = _w1x1(params["sc_conv_w"]) * ss.reshape(1, -1)
        shortcut = matmul_bias_act(x_s, ws, bs, relu=False)
    else:
        # identity shortcut (requires stride==1 and cin==out_planes)
        shortcut = x.reshape(n * h * w, cin)

    # --- conv3 (1x1) + bn3 + residual add + relu (fused) -------------------
    s3, b3 = _fold_bn(*params["bn3"])
    w3 = _w1x1(params["conv3_w"]) * s3.reshape(1, -1)
    o = matmul_bias_act(o2d, w3, b3, relu=True, residual=shortcut,
                        out_dtype=jnp.float32)

    o = o.reshape(n, ho, wo, out_planes)
    return jnp.transpose(o, (0, 3, 1, 2))                        # NHWC -> NCHW


# ---------------------------------------------------------------------------
# Pure-JAX reference (lax.conv, f32) for correctness check
# ---------------------------------------------------------------------------
def _ref_conv(x_nhwc, w_oihw, stride, pad):
    return jax.lax.conv_general_dilated(
        x_nhwc, w_oihw, window_strides=(stride, stride),
        padding=[(pad, pad), (pad, pad)],
        dimension_numbers=("NHWC", "OIHW", "NHWC"))


def _ref_bn(x, bn):
    gamma, beta, mean, var = bn
    return (x - mean) / jnp.sqrt(var + 1e-5) * gamma + beta


def bottleneck_reference(params, x_nchw):
    stride = params["stride"]
    x = jnp.transpose(x_nchw, (0, 2, 3, 1)).astype(jnp.float32)
    o = jax.nn.relu(_ref_bn(_ref_conv(x, params["conv1_w"], 1, 0), params["bn1"]))
    o = jax.nn.relu(_ref_bn(_ref_conv(o, params["conv2_w"], stride, 1), params["bn2"]))
    o = _ref_bn(_ref_conv(o, params["conv3_w"], 1, 0), params["bn3"])
    if params["has_shortcut"]:
        sc = _ref_bn(_ref_conv(x, params["sc_conv_w"], stride, 0), params["sc_bn"])
    else:
        sc = x
    o = jax.nn.relu(o + sc)
    return jnp.transpose(o, (0, 3, 1, 2))


# ---------------------------------------------------------------------------
if __name__ == "__main__":
    key = jax.random.PRNGKey(0)
    k_x, k_p = jax.random.split(key)

    in_planes, planes, stride = 4, 4, 1     # out channels = 16 -> shortcut conv used
    x = jax.random.normal(k_x, (2, in_planes, 16, 16), jnp.float32)   # NCHW

    params = init_bottleneck_params(k_p, in_planes, planes, stride)

    out = jax.block_until_ready(bottleneck_forward(params, x))
    ref = jax.block_until_ready(bottleneck_reference(params, x))

    assert out.shape == (2, planes * EXPANSION, 16, 16), out.shape
    # bf16 MXU inputs with f32 accumulation -> loosened tolerance vs f32 reference
    np.testing.assert_allclose(np.asarray(out), np.asarray(ref),
                               rtol=3e-2, atol=3e-2)

    print("KERNEL_OK")
</pallas_src>

<mosaic_0001>
module attributes {stable_mosaic.version = 11 : i64} {
  func.func @_mm_bias_act_kernel(%arg0: i32, %arg1: i32, %arg2: memref<256x4xbf16, #tpu.memory_space<vmem>>, %arg3: memref<4x4xbf16, #tpu.memory_space<vmem>>, %arg4: memref<1x4xf32, #tpu.memory_space<vmem>>, %arg5: memref<256x4xbf16, #tpu.memory_space<vmem>>) attributes {dimension_semantics = [#tpu.dimension_semantics<parallel>, #tpu.dimension_semantics<parallel>], iteration_bounds = array<i64: 2, 1>, scalar_prefetch = 0 : i64, scratch_operands = 0 : i64, tpu.core_type = #tpu.core_type<tc>, window_params = [{transform_indices = @transform_0, window_bounds = array<i64: 256, 4>}, {transform_indices = @transform_1, window_bounds = array<i64: 4, 4>}, {transform_indices = @transform_2, window_bounds = array<i64: 1, 4>}, {transform_indices = @transform_3, window_bounds = array<i64: 256, 4>}]} {
    %c0 = arith.constant 0 : index
    %c0_0 = arith.constant 0 : index
    %0 = vector.load %arg2[%c0, %c0_0] : memref<256x4xbf16, #tpu.memory_space<vmem>>, vector<256x4xbf16>
    %c0_1 = arith.constant 0 : index
    %c0_2 = arith.constant 0 : index
    %1 = vector.load %arg3[%c0_1, %c0_2] : memref<4x4xbf16, #tpu.memory_space<vmem>>, vector<4x4xbf16>
    %cst = arith.constant dense<0.000000e+00> : vector<256x4xf32>
    %2 = tpu.matmul %0, %1, %cst {dimension_numbers = #tpu.dot_dimension_numbers<[1], [0], [0], [1], [0, 0, 1, 1], [], []>} : vector<256x4xbf16>, vector<4x4xbf16>, vector<256x4xf32> -> vector<256x4xf32>
    %c0_3 = arith.constant 0 : index
    %c0_4 = arith.constant 0 : index
    %3 = vector.load %arg4[%c0_3, %c0_4] : memref<1x4xf32, #tpu.memory_space<vmem>>, vector<1x4xf32>
    %4 = vector.broadcast %3 : vector<1x4xf32> to vector<256x4xf32>
    %5 = arith.addf %2, %4 : vector<256x4xf32>
    %cst_5 = arith.constant 0.000000e+00 : f32
    %6 = vector.broadcast %cst_5 : f32 to vector<256x4xf32>
    %7 = arith.maximumf %5, %6 : vector<256x4xf32>
    %8 = arith.truncf %7 : vector<256x4xf32> to vector<256x4xbf16>
    %c0_6 = arith.constant 0 : index
    %c0_7 = arith.constant 0 : index
    %9 = vector.load %arg5[%c0_6, %c0_7] : memref<256x4xbf16, #tpu.memory_space<vmem>>, vector<256x4xbf16>
    tpu.vector_store %arg5[%c0_6, %c0_7], %8 {strides = array<i32>} : memref<256x4xbf16, #tpu.memory_space<vmem>>, vector<256x4xbf16>,
    return
  }
  func.func @transform_0(%arg0: i32, %arg1: i32) -> (i32, i32) {
    %c0_i32 = arith.constant 0 : i32
    %c0_i32_0 = arith.constant 0 : i32
    return %arg0, %c0_i32 : i32, i32
  }
  func.func @transform_1(%arg0: i32, %arg1: i32) -> (i32, i32) {
    %c0_i32 = arith.constant 0 : i32
    %c0_i32_0 = arith.constant 0 : i32
    return %c0_i32, %arg1 : i32, i32
  }
  func.func @transform_2(%arg0: i32, %arg1: i32) -> (i32, i32) {
    %c0_i32 = arith.constant 0 : i32
    %c0_i32_0 = arith.constant 0 : i32
    return %c0_i32, %arg1 : i32, i32
  }
  func.func @transform_3(%arg0: i32, %arg1: i32) -> (i32, i32) {
    %c0_i32 = arith.constant 0 : i32
    return %arg0, %arg1 : i32, i32
  }
}

</mosaic_0001>

<llo_original>
// kernel: tpu_custom_call.1
$region0: #{tpu_custom_call.1}
  #allocation0 [shape = 'u32[]', space=smem, size = 0x4, offset = 0x4, fixed_abs, tag = 'smem constant byte address 0x4 - core index']
  #allocation1 [shape = 'u32[144,128]{1,0:T(1,128)}', space=vmem, size = 0x12000, scoped, tag = 'internal scratch']
  %s0 = inlined_call_operand.vmem [shape: bf16[512,4], index: 0, kind: input, shape index: {}]
  %s1 = inlined_call_operand.vmem [shape: bf16[4,4], index: 1, kind: input, shape index: {}]
  %s2 = inlined_call_operand.vmem [shape: f32[1,4], index: 2, kind: input, shape index: {}]
  %s3 = inlined_call_operand.vmem [shape: bf16[512,4], index: 3, kind: output, shape index: {}]
  %s4 = sld [smem:[#allocation0]]
  $region45: #{tpu_custom_call.1} parent=0
    _
  %s6 = ssub.s32 1, %s4
  %s7 = scalar_select 0, %s6, %s4
  loop: start=0, step=1, limit=4
  $region2: #{tpu_custom_call.1} parent=0 // loop_pre_header
    _
  $region3: #{tpu_custom_call.1} parent=0 // loop_header
    %s9 = sphi 0, %s13
    %p10 = scmp.ge.s32.totalorder %s9, 4
    %s16 = sphi 0, %s28
    %s17 = sphi 0, %s24
    %s18 = sphi 0, %s16
    %s19 = sphi 0, %s17
    %s20 = sphi 0, %s18
    %s21 = sphi 0, %s19
    %s31 = sphi 0, %s33
    %s34 = sphi 0, %s31
    %s35 = sphi 0, %s34
    %s51 = sphi 0, %s35
    %s57 = sphi 0, %s59
    %s60 = sphi 0, %s57
    %s61 = sphi 0, %s60
    %s77 = sphi 0, %s61
    %s83 = sphi 0, %s85
    %s86 = sphi 0, %s83
    %s87 = sphi 0, %s86
    %s103 = sphi 0, %s87
    %s111 = sphi 0, %s113
    %s114 = sphi 0, %s111
    %s115 = sphi 0, %s114
    %s131 = sphi 0, %s115
  $region4: #{tpu_custom_call.1} parent=0 // loop_header_branch
    %12 = sbr.rel (%p10) target = $region8
  $region5: #{tpu_custom_call.1} parent=0 // loop_body
    %s14 = ssub.s32 %s9, 1
    %s15 = ssub.s32 %s9, 2
    %s22 = sadd.s32 1, %s17
    %p23 = scmp.ge.s32.totalorder %s22, 1
    %s24 = scalar_select %p23, 0, %s22
    %s25 = sadd.s32 1, %s16
    %s26 = scalar_select %p23, %s25, %s16
    %p27 = scmp.ge.s32.totalorder %s26, 2
    %s28 = scalar_select %p27, 0, %s26
    %s29 = ssub.s32 %s16, %s28
    %p30 = scmp.eq.s32.totalorder %s29, 0
    %s32 = sadd.s32 %s31, 1
    %s33 = scalar_select %p30, %s31, %s32
    %p36 = pneg %p30
    %p37 = scmp.eq.s32.totalorder %s9, 1
    %p38 = por %p36, %p37
    %p39 = scmp.ne.s32.totalorder %s31, %s34
    %p40 = scmp.eq.s32.totalorder %s9, 0
    %p41 = por %p39, %p40
    %p42 = scmp.ne.s32.totalorder %s31, %s34
    %p43 = scmp.eq.s32.totalorder %s14, 1
    %p44 = por %p42, %p43
    %p45 = scmp.ne.s32.totalorder %s34, %s35
    %p46 = scmp.eq.s32.totalorder %s14, 0
    %p47 = por %p45, %p46
    %p48 = scmp.ne.s32.totalorder %s34, %s35
    %p49 = scmp.eq.s32.totalorder %s15, 1
    %p50 = por %p48, %p49
    %p52 = scmp.ne.s32.totalorder %s35, %s51
    %p53 = scmp.eq.s32.totalorder %s15, 0
    %p54 = por %p52, %p53
    %s55 = ssub.s32 %s17, %s24
    %p56 = scmp.eq.s32.totalorder %s55, 0
    %s58 = sadd.s32 %s57, 1
    %s59 = scalar_select %p56, %s57, %s58
    %p62 = pneg %p56
    %p63 = scmp.eq.s32.totalorder %s9, 1
    %p64 = por %p62, %p63
    %p65 = scmp.ne.s32.totalorder %s57, %s60
    %p66 = scmp.eq.s32.totalorder %s9, 0
    %p67 = por %p65, %p66
    %p68 = scmp.ne.s32.totalorder %s57, %s60
    %p69 = scmp.eq.s32.totalorder %s14, 1
    %p70 = por %p68, %p69
    %p71 = scmp.ne.s32.totalorder %s60, %s61
    %p72 = scmp.eq.s32.totalorder %s14, 0
    %p73 = por %p71, %p72
    %p74 = scmp.ne.s32.totalorder %s60, %s61
    %p75 = scmp.eq.s32.totalorder %s15, 1
    %p76 = por %p74, %p75
    %p78 = scmp.ne.s32.totalorder %s61, %s77
    %p79 = scmp.eq.s32.totalorder %s15, 0
    %p80 = por %p78, %p79
    %s81 = ssub.s32 %s17, %s24
    %p82 = scmp.eq.s32.totalorder %s81, 0
    %s84 = sadd.s32 %s83, 1
    %s85 = scalar_select %p82, %s83, %s84
    %p88 = pneg %p82
    %p89 = scmp.eq.s32.totalorder %s9, 1
    %p90 = por %p88, %p89
    %p91 = scmp.ne.s32.totalorder %s83, %s86
    %p92 = scmp.eq.s32.totalorder %s9, 0
    %p93 = por %p91, %p92
    %p94 = scmp.ne.s32.totalorder %s83, %s86
    %p95 = scmp.eq.s32.totalorder %s14, 1
    %p96 = por %p94, %p95
    %p97 = scmp.ne.s32.totalorder %s86, %s87
    %p98 = scmp.eq.s32.totalorder %s14, 0
    %p99 = por %p97, %p98
    %p100 = scmp.ne.s32.totalorder %s86, %s87
    %p101 = scmp.eq.s32.totalorder %s15, 1
    %p102 = por %p100, %p101
    %p104 = scmp.ne.s32.totalorder %s87, %s103
    %p105 = scmp.eq.s32.totalorder %s15, 0
    %p106 = por %p104, %p105
    %s107 = ssub.s32 %s16, %s28
    %s108 = ssub.s32 %s17, %s24
    %s109 = sor.u32 %s107, %s108
    %p110 = scmp.eq.s32.totalorder %s109, 0
    %s112 = sadd.s32 %s111, 1
    %s113 = scalar_select %p110, %s111, %s112
    %p116 = pneg %p110
    %p117 = scmp.eq.s32.totalorder %s9, 1
    %p118 = por %p116, %p117
    %p119 = scmp.ne.s32.totalorder %s111, %s114
    %p120 = scmp.eq.s32.totalorder %s9, 0
    %p121 = por %p119, %p120
    %p122 = scmp.ne.s32.totalorder %s111, %s114
    %p123 = scmp.eq.s32.totalorder %s14, 1
    %p124 = por %p122, %p123
    %p125 = scmp.ne.s32.totalorder %s114, %s115
    %p126 = scmp.eq.s32.totalorder %s14, 0
    %p127 = por %p125, %p126
    %p128 = scmp.ne.s32.totalorder %s114, %s115
    %p129 = scmp.eq.s32.totalorder %s15, 1
    %p130 = por %p128, %p129
    %p132 = scmp.ne.s32.totalorder %s115, %s131
    %p133 = scmp.eq.s32.totalorder %s15, 0
    %p134 = por %p132, %p133
    %p135 = scmp.le.s32.totalorder 1, %s9
    %p136 = scmp.lt.s32.totalorder %s9, 3
    %p137 = pnand %p135, %p136
    %p138 = pneg %p137
    // Predicated region
    $region9: #{tpu_custom_call.1} parent=5 // pred_check
      _
    $region10: #{tpu_custom_call.1} parent=5 // pred_check_branch
      %140 = sbr.rel (%p137) target = $region12
    $region11: #{tpu_custom_call.1} parent=5 // pred_region
      %s141 = ssub.s32 %s9, 1
      // Predicated region
      $region13: #{tpu_custom_call.1} parent=11 // pred_check
        %p142 = pneg %p73
      $region14: #{tpu_custom_call.1} parent=11 // pred_check_branch
        %144 = sbr.rel (%p142) target = $region16
      $region15: #{tpu_custom_call.1} parent=11 // pred_region
        %p145 = scmp.lt.s32.totalorder %s19, 0
        %s146 = scalar_select %p145, %s19, 0
        %s147 = smul.addr %s146, 2
        %s148 = scalar_lea.vmem %s1, %s147
      $region16: #{tpu_custom_call.1} parent=11 // pred_fallthru
        _
      // Predicated region
      $region17: #{tpu_custom_call.1} parent=11 // pred_check
        %p149 = pneg %p99
      $region18: #{tpu_custom_call.1} parent=11 // pred_check_branch
        %151 = sbr.rel (%p149) target = $region20
      $region19: #{tpu_custom_call.1} parent=11 // pred_region
        %p152 = scmp.lt.s32.totalorder %s19, 0
        %s153 = scalar_select %p152, %s19, 0
        %s154 = scalar_lea.vmem %s2, %s153
      $region20: #{tpu_custom_call.1} parent=11 // pred_fallthru
        _
    $region12: #{tpu_custom_call.1} parent=5 // pred_fallthru
      _
    %p155 = scmp.lt.s32.totalorder %s9, 2
    // Predicated region
    $region21: #{tpu_custom_call.1} parent=5 // pred_check
      %p156 = pneg %p155
    $region22: #{tpu_custom_call.1} parent=5 // pred_check_branch
      %158 = sbr.rel (%p156) target = $region24
    $region23: #{tpu_custom_call.1} parent=5 // pred_region
      // Predicated region
      $region25: #{tpu_custom_call.1} parent=23 // pred_check
        %p159 = pneg %p41
      $region26: #{tpu_custom_call.1} parent=23 // pred_check_branch
        %161 = sbr.rel (%p159) target = $region28
      $region27: #{tpu_custom_call.1} parent=23 // pred_region
        %s162 = smul.u32 32, %s16
        %p163 = scmp.lt.s32.totalorder %s162, 63
        %s164 = scalar_select %p163, %s162, 63
        %s165 = smul.addr %s164, 4
        %s166 = scalar_lea.vmem %s0, %s165
        %s167 = smul.u32 32, %s16
      $region28: #{tpu_custom_call.1} parent=23 // pred_fallthru
        _
    $region24: #{tpu_custom_call.1} parent=5 // pred_fallthru
      _
    %p168 = scmp.le.s32.totalorder 1, %s9
    %p169 = scmp.lt.s32.totalorder %s9, 3
    %p170 = pnand %p168, %p169
    %p171 = pneg %p170
    // Predicated region
    $region29: #{tpu_custom_call.1} parent=5 // pred_check
      _
    $region30: #{tpu_custom_call.1} parent=5 // pred_check_branch
      %173 = sbr.rel (%p170) target = $region32
    $region31: #{tpu_custom_call.1} parent=5 // pred_region
      %s174 = ssub.s32 %s9, 1
      %s175 = smul.u32 32, %s18
      %p176 = scmp.lt.s32.totalorder %s175, 63
      %s177 = scalar_select %p176, %s175, 63
      %s178 = smul.addr %s177, 4
      %s179 = scalar_lea.vmem %s0, %s178
      %p180 = pneg %p47
      %p181 = pneg %p44
      %p182 = scmp.lt.s32.totalorder %s19, 0
      %s183 = scalar_select %p182, %s19, 0
      %s184 = smul.addr %s183, 2
      %s185 = scalar_lea.vmem %s1, %s184
      %p186 = pneg %p73
      %p187 = pneg %p70
      %p188 = scmp.lt.s32.totalorder %s19, 0
      %s189 = scalar_select %p188, %s19, 0
      %s190 = scalar_lea.vmem %s2, %s189
      %p191 = pneg %p99
      %p192 = pneg %p96
      %p193 = pneg %p127
      %p194 = pneg %p124
      %s195 = smul.u32 32, %s18
      %p196 = scmp.lt.s32.totalorder %s195, 63
      %s197 = scalar_select %p196, %s195, 63
      %p198 = scmp.lt.s32.totalorder %s19, 0
      %s199 = scalar_select %p198, %s19, 0
      %s200 = sadd.s32 %s199, %s197
      %s201 = smul.addr %s200, 4
      %s202 = scalar_lea.vmem %s3, %s201
      %s203 = smul.u32 32, %s18
      %p204 = scmp.lt.s32.totalorder %s203, 63
      %s205 = scalar_select %p204, %s203, 63
      %s206 = smul.addr %s205, 4
      %s207 = scalar_lea.vmem %s0, %s206
      %s208 = smul.u32 32, %s18
      %p209 = scmp.lt.s32.totalorder %s19, 0
      %s210 = scalar_select %p209, %s19, 0
      %s211 = smul.addr %s210, 2
      %s212 = scalar_lea.vmem %s1, %s211
      %p213 = scmp.lt.s32.totalorder %s19, 0
      %s214 = scalar_select %p213, %s19, 0
      %s215 = scalar_lea.vmem %s2, %s214
      %s216 = smul.u32 32, %s18
      %p217 = scmp.lt.s32.totalorder %s216, 63
      %s218 = scalar_select %p217, %s216, 63
      %p219 = scmp.lt.s32.totalorder %s19, 0
      %s220 = scalar_select %p219, %s19, 0
      %s221 = sadd.s32 %s220, %s218
      %s222 = smul.addr %s221, 4
      %s223 = scalar_lea.vmem %s3, %s222
      %s224 = smul.u32 32, %s18
      %v226 = vld [vmem:[%s207] sm:$0xf]
      %v227 = vld [vmem:[%s207 + $0x4] sm:$0xf]
      %v228 = vld [vmem:[%s207 + $0x8] sm:$0xf]
      %v229 = vld [vmem:[%s207 + $0xc] sm:$0xf]
      %v230 = vld [vmem:[%s207 + $0x10] sm:$0xf]
      %v231 = vld [vmem:[%s207 + $0x14] sm:$0xf]
      %v232 = vld [vmem:[%s207 + $0x18] sm:$0xf]
      %v233 = vld [vmem:[%s207 + $0x1c] sm:$0xf]
      %v234 = vld [vmem:[%s207 + $0x20] sm:$0xf]
      %v235 = vld [vmem:[%s207 + $0x24] sm:$0xf]
      %v236 = vld [vmem:[%s207 + $0x28] sm:$0xf]
      %v237 = vld [vmem:[%s207 + $0x2c] sm:$0xf]
      %v238 = vld [vmem:[%s207 + $0x30] sm:$0xf]
      %v239 = vld [vmem:[%s207 + $0x34] sm:$0xf]
      %v240 = vld [vmem:[%s207 + $0x38] sm:$0xf]
      %v241 = vld [vmem:[%s207 + $0x3c] sm:$0xf]
      %v242 = vld [vmem:[%s207 + $0x40] sm:$0xf]
      %v243 = vld [vmem:[%s207 + $0x44] sm:$0xf]
      %v244 = vld [vmem:[%s207 + $0x48] sm:$0xf]
      %v245 = vld [vmem:[%s207 + $0x4c] sm:$0xf]
      %v246 = vld [vmem:[%s207 + $0x50] sm:$0xf]
      %v247 = vld [vmem:[%s207 + $0x54] sm:$0xf]
      %v248 = vld [vmem:[%s207 + $0x58] sm:$0xf]
      %v249 = vld [vmem:[%s207 + $0x5c] sm:$0xf]
      %v250 = vld [vmem:[%s207 + $0x60] sm:$0xf]
      %v251 = vld [vmem:[%s207 + $0x64] sm:$0xf]
      %v252 = vld [vmem:[%s207 + $0x68] sm:$0xf]
      %v253 = vld [vmem:[%s207 + $0x6c] sm:$0xf]
      %v254 = vld [vmem:[%s207 + $0x70] sm:$0xf]
      %v255 = vld [vmem:[%s207 + $0x74] sm:$0xf]
      %v256 = vld [vmem:[%s207 + $0x78] sm:$0xf]
      %v257 = vld [vmem:[%s207 + $0x7c] sm:$0xf]
      %v258 = vld [vmem:[%s212] sm:$0x3]
      %v259 = vld [vmem:[%s215] sm:$0x1]
      %v261 = vlaneseq
      %v262 = vshrl.u32 %v261, 7
      %v263 = vsub.s32 0, %v262
      %v264 = vrot.slane %v259, %v263
      %v298 = vunpack.c.l.b16 %v226
      %v299 = vunpack.c.l.b16 %v227
      %v300 = vunpack.c.l.b16 %v228
      %v301 = vunpack.c.l.b16 %v229
      %v302 = vunpack.c.l.b16 %v230
      %v303 = vunpack.c.l.b16 %v231
      %v304 = vunpack.c.l.b16 %v232
      %v305 = vunpack.c.l.b16 %v233
      %v306 = vunpack.c.l.b16 %v234
      %v307 = vunpack.c.l.b16 %v235
      %v308 = vunpack.c.l.b16 %v236
      %v309 = vunpack.c.l.b16 %v237
      %v310 = vunpack.c.l.b16 %v238
      %v311 = vunpack.c.l.b16 %v239
      %v312 = vunpack.c.l.b16 %v240
      %v313 = vunpack.c.l.b16 %v241
      %v314 = vunpack.c.l.b16 %v242
      %v315 = vunpack.c.l.b16 %v243
      %v316 = vunpack.c.l.b16 %v244
      %v317 = vunpack.c.l.b16 %v245
      %v318 = vunpack.c.l.b16 %v246
      %v319 = vunpack.c.l.b16 %v247
      %v320 = vunpack.c.l.b16 %v248
      %v321 = vunpack.c.l.b16 %v249
      %v322 = vunpack.c.l.b16 %v250
      %v323 = vunpack.c.l.b16 %v251
      %v324 = vunpack.c.l.b16 %v252
      %v325 = vunpack.c.l.b16 %v253
      %v326 = vunpack.c.l.b16 %v254
      %v327 = vunpack.c.l.b16 %v255
      %v328 = vunpack.c.l.b16 %v256
      %v329 = vunpack.c.l.b16 %v257
      %v330 = vpack.c.b16 %v299, %v298
      %v331 = vpack.c.b16 %v301, %v300
      %v332 = vpack.c.b16 %v303, %v302
      %v333 = vpack.c.b16 %v305, %v304
      %v334 = vpack.c.b16 %v307, %v306
      %v335 = vpack.c.b16 %v309, %v308
      %v336 = vpack.c.b16 %v311, %v310
      %v337 = vpack.c.b16 %v313, %v312
      %v338 = vpack.c.b16 %v315, %v314
      %v339 = vpack.c.b16 %v317, %v316
      %v340 = vpack.c.b16 %v319, %v318
      %v341 = vpack.c.b16 %v321, %v320
      %v342 = vpack.c.b16 %v323, %v322
      %v343 = vpack.c.b16 %v325, %v324
      %v344 = vpack.c.b16 %v327, %v326
      %v345 = vpack.c.b16 %v329, %v328
      %vm346 = vcmask 31744
      %v348 = vsel %vm346, %v330, 0
      %v351 = vsel %vm346, %v331, 0
      %v354 = vsel %vm346, %v332, 0
      %v357 = vsel %vm346, %v333, 0
      %v360 = vsel %vm346, %v334, 0
      %v363 = vsel %vm346, %v335, 0
      %v366 = vsel %vm346, %v336, 0
      %v369 = vsel %vm346, %v337, 0
      %v372 = vsel %vm346, %v338, 0
      %v375 = vsel %vm346, %v339, 0
      %v378 = vsel %vm346, %v340, 0
      %v381 = vsel %vm346, %v341, 0
      %v384 = vsel %vm346, %v342, 0
      %v387 = vsel %vm346, %v343, 0
      %v390 = vsel %vm346, %v344, 0
      %v393 = vsel %vm346, %v345, 0
      %vm395 = vcmask 1041408
      %v397 = vsel %vm395, %v258, 0
      %399 = vmatprep.subr.bf16.mxu0 0
      %400 = vmatpush1.bf16.msra.mxu0 %v397
      %401 = vmatprep.subr.bf16.mxu0 0
      %402 = vmatpush1.bf16.msra.mxu0 0
      %403 = vmatprep.subr.bf16.mxu0 0
      %404 = vmatpush1.bf16.msra.mxu0 0
      %405 = vmatprep.subr.bf16.mxu0 0
      %406 = vmatpush1.bf16.msra.mxu0 0
      %407 = vmatprep.subr.bf16.mxu0 0
      %408 = vmatpush1.bf16.msra.mxu0 0
      %409 = vmatprep.subr.bf16.mxu0 0
      %410 = vmatpush1.bf16.msra.mxu0 0
      %411 = vmatprep.subr.bf16.mxu0 0
      %412 = vmatpush1.bf16.msra.mxu0 0
      %413 = vmatprep.subr.bf16.mxu0 0
      %414 = vmatpush1.bf16.msra.mxu0 0
      %415 = vmatprep.subr.bf16.mxu0 0
      %416 = vmatpush1.bf16.msra.mxu0 0
      %417 = vmatprep.subr.bf16.mxu0 0
      %418 = vmatpush1.bf16.msra.mxu0 0
      %419 = vmatprep.subr.bf16.mxu0 0
      %420 = vmatpush1.bf16.msra.mxu0 0
      %421 = vmatprep.subr.bf16.mxu0 0
      %422 = vmatpush1.bf16.msra.mxu0 0
      %423 = vmatprep.subr.bf16.mxu0 0
      %424 = vmatpush1.bf16.msra.mxu0 0
      %425 = vmatprep.subr.bf16.mxu0 0
      %426 = vmatpush1.bf16.msra.mxu0 0
      %427 = vmatprep.subr.bf16.mxu0 0
      %428 = vmatpush1.bf16.msra.mxu0 0
      %429 = vmatprep.subr.bf16.mxu0 0
      %430 = vmatpush1.bf16.msra.mxu0 0
      %431 = vmatprep.mubr.bf16.mxu0 0
      %432 = vmatmul.mubr.bf16.gmra.mrb[0].mxu0 %v348
      %v433 = vpop.f32.mrb[0].mxu0
      %v434 = vadd.f32 %v264, %v433
      %v435 = vpop.f32.mrb[0].mxu0
      %v436 = vpop.f32.mrb[0].mxu0
      %v437 = vadd.f32 %v264, %v436
      %v438 = vpop.f32.mrb[0].mxu0
      %439 = vmatprep.mubr.bf16.mxu0 0
      %440 = vmatmul.mubr.bf16.gmra.mrb[0].mxu0 %v351
      %v441 = vpop.f32.mrb[0].mxu0
      %v442 = vadd.f32 %v264, %v441
      %v443 = vpop.f32.mrb[0].mxu0
      %v444 = vpop.f32.mrb[0].mxu0
      %v445 = vadd.f32 %v264, %v444
      %v446 = vpop.f32.mrb[0].mxu0
      %447 = vmatprep.mubr.bf16.mxu0 0
      %448 = vmatmul.mubr.bf16.gmra.mrb[0].mxu0 %v354
      %v449 = vpop.f32.mrb[0].mxu0
      %v450 = vadd.f32 %v264, %v449
      %v451 = vpop.f32.mrb[0].mxu0
      %v452 = vpop.f32.mrb[0].mxu0
      %v453 = vadd.f32 %v264, %v452
      %v454 = vpop.f32.mrb[0].mxu0
      %455 = vmatprep.mubr.bf16.mxu0 0
      %456 = vmatmul.mubr.bf16.gmra.mrb[0].mxu0 %v357
      %v457 = vpop.f32.mrb[0].mxu0
      %v458 = vadd.f32 %v264, %v457
      %v459 = vpop.f32.mrb[0].mxu0
      %v460 = vpop.f32.mrb[0].mxu0
      %v461 = vadd.f32 %v264, %v460
      %v462 = vpop.f32.mrb[0].mxu0
      %463 = vmatprep.mubr.bf16.mxu0 0
      %464 = vmatmul.mubr.bf16.gmra.mrb[0].mxu0 %v360
      %v465 = vpop.f32.mrb[0].mxu0
      %v466 = vadd.f32 %v264, %v465
      %v467 = vpop.f32.mrb[0].mxu0
      %v468 = vpop.f32.mrb[0].mxu0
      %v469 = vadd.f32 %v264, %v468
      %v470 = vpop.f32.mrb[0].mxu0
      %471 = vmatprep.mubr.bf16.mxu0 0
      %472 = vmatmul.mubr.bf16.gmra.mrb[0].mxu0 %v363
      %v473 = vpop.f32.mrb[0].mxu0
      %v474 = vadd.f32 %v264, %v473
      %v475 = vpop.f32.mrb[0].mxu0
      %v476 = vpop.f32.mrb[0].mxu0
      %v477 = vadd.f32 %v264, %v476
      %v478 = vpop.f32.mrb[0].mxu0
      %479 = vmatprep.mubr.bf16.mxu0 0
      %480 = vmatmul.mubr.bf16.gmra.mrb[0].mxu0 %v366
      %v481 = vpop.f32.mrb[0].mxu0
      %v482 = vadd.f32 %v264, %v481
      %v483 = vpop.f32.mrb[0].mxu0
      %v484 = vpop.f32.mrb[0].mxu0
      %v485 = vadd.f32 %v264, %v484
      %v486 = vpop.f32.mrb[0].mxu0
      %487 = vmatprep.mubr.bf16.mxu0 0
      %488 = vmatmul.mubr.bf16.gmra.mrb[0].mxu0 %v369
      %v489 = vpop.f32.mrb[0].mxu0
      %v490 = vadd.f32 %v264, %v489
      %v491 = vpop.f32.mrb[0].mxu0
      %v492 = vpop.f32.mrb[0].mxu0
      %v493 = vadd.f32 %v264, %v492
      %v494 = vpop.f32.mrb[0].mxu0
      %495 = vmatprep.mubr.bf16.mxu0 0
      %496 = vmatmul.mubr.bf16.gmra.mrb[0].mxu0 %v372
      %v497 = vpop.f32.mrb[0].mxu0
      %v498 = vadd.f32 %v264, %v497
      %v499 = vpop.f32.mrb[0].mxu0
      %v500 = vpop.f32.mrb[0].mxu0
      %v501 = vadd.f32 %v264, %v500
      %v502 = vpop.f32.mrb[0].mxu0
      %503 = vmatprep.mubr.bf16.mxu0 0
      %504 = vmatmul.mubr.bf16.gmra.mrb[0].mxu0 %v375
      %v505 = vpop.f32.mrb[0].mxu0
      %v506 = vadd.f32 %v264, %v505
      %v507 = vpop.f32.mrb[0].mxu0
      %v508 = vpop.f32.mrb[0].mxu0
      %v509 = vadd.f32 %v264, %v508
      %v510 = vpop.f32.mrb[0].mxu0
      %511 = vmatprep.mubr.bf16.mxu0 0
      %512 = vmatmul.mubr.bf16.gmra.mrb[0].mxu0 %v378
      %v513 = vpop.f32.mrb[0].mxu0
      %v514 = vadd.f32 %v264, %v513
      %v515 = vpop.f32.mrb[0].mxu0
      %v516 = vpop.f32.mrb[0].mxu0
      %v517 = vadd.f32 %v264, %v516
      %v518 = vpop.f32.mrb[0].mxu0
      %519 = vmatprep.mubr.bf16.mxu0 0
      %520 = vmatmul.mubr.bf16.gmra.mrb[0].mxu0 %v381
      %v521 = vpop.f32.mrb[0].mxu0
      %v522 = vadd.f32 %v264, %v521
      %v523 = vpop.f32.mrb[0].mxu0
      %v524 = vpop.f32.mrb[0].mxu0
      %v525 = vadd.f32 %v264, %v524
      %v526 = vpop.f32.mrb[0].mxu0
      %527 = vmatprep.mubr.bf16.mxu0 0
      %528 = vmatmul.mubr.bf16.gmra.mrb[0].mxu0 %v384
      %v529 = vpop.f32.mrb[0].mxu0
      %v530 = vadd.f32 %v264, %v529
      %v531 = vpop.f32.mrb[0].mxu0
      %v532 = vpop.f32.mrb[0].mxu0
      %v533 = vadd.f32 %v264, %v532
      %v534 = vpop.f32.mrb[0].mxu0
      %535 = vmatprep.mubr.bf16.mxu0 0
      %536 = vmatmul.mubr.bf16.gmra.mrb[0].mxu0 %v387
      %v537 = vpop.f32.mrb[0].mxu0
      %v538 = vadd.f32 %v264, %v537
      %v539 = vpop.f32.mrb[0].mxu0
      %v540 = vpop.f32.mrb[0].mxu0
      %v541 = vadd.f32 %v264, %v540
      %v542 = vpop.f32.mrb[0].mxu0
      %543 = vmatprep.mubr.bf16.mxu0 0
      %544 = vmatmul.mubr.bf16.gmra.mrb[0].mxu0 %v390
      %v545 = vpop.f32.mrb[0].mxu0
      %v546 = vadd.f32 %v264, %v545
      %v547 = vpop.f32.mrb[0].mxu0
      %v548 = vpop.f32.mrb[0].mxu0
      %v549 = vadd.f32 %v264, %v548
      %v550 = vpop.f32.mrb[0].mxu0
      %551 = vmatprep.mubr.bf16.mxu0 0
      %552 = vmatmul.mubr.bf16.gmra.mrb[0].mxu0 %v393
      %v553 = vpop.f32.mrb[0].mxu0
      %v554 = vadd.f32 %v264, %v553
      %v555 = vpop.f32.mrb[0].mxu0
      %v556 = vpop.f32.mrb[0].mxu0
      %v557 = vadd.f32 %v264, %v556
      %v558 = vpop.f32.mrb[0].mxu0
      %559 = vdwg.mxu0
      %v560 = vmax.f32 %v434, 0.0
      %v561 = vmax.f32 %v437, 0.0
      %v562 = vmax.f32 %v442, 0.0
      %v563 = vmax.f32 %v445, 0.0
      %v564 = vmax.f32 %v450, 0.0
      %v565 = vmax.f32 %v453, 0.0
      %v566 = vmax.f32 %v458, 0.0
      %v567 = vmax.f32 %v461, 0.0
      %v568 = vmax.f32 %v466, 0.0
      %v569 = vmax.f32 %v469, 0.0
      %v570 = vmax.f32 %v474, 0.0
      %v571 = vmax.f32 %v477, 0.0
      %v572 = vmax.f32 %v482, 0.0
      %v573 = vmax.f32 %v485, 0.0
      %v574 = vmax.f32 %v490, 0.0
      %v575 = vmax.f32 %v493, 0.0
      %v576 = vmax.f32 %v498, 0.0
      %v577 = vmax.f32 %v501, 0.0
      %v578 = vmax.f32 %v506, 0.0
      %v579 = vmax.f32 %v509, 0.0
      %v580 = vmax.f32 %v514, 0.0
      %v581 = vmax.f32 %v517, 0.0
      %v582 = vmax.f32 %v522, 0.0
      %v583 = vmax.f32 %v525, 0.0
      %v584 = vmax.f32 %v530, 0.0
      %v585 = vmax.f32 %v533, 0.0
      %v586 = vmax.f32 %v538, 0.0
      %v587 = vmax.f32 %v541, 0.0
      %v588 = vmax.f32 %v546, 0.0
      %v589 = vmax.f32 %v549, 0.0
      %v590 = vmax.f32 %v554, 0.0
      %v591 = vmax.f32 %v557, 0.0
      %v592 = vpack.c.bf16 %v561, %v560
      %v593 = vpack.c.bf16 %v563, %v562
      %v594 = vpack.c.bf16 %v565, %v564
      %v595 = vpack.c.bf16 %v567, %v566
      %v596 = vpack.c.bf16 %v569, %v568
      %v597 = vpack.c.bf16 %v571, %v570
      %v598 = vpack.c.bf16 %v573, %v572
      %v599 = vpack.c.bf16 %v575, %v574
      %v600 = vpack.c.bf16 %v577, %v576
      %v601 = vpack.c.bf16 %v579, %v578
      %v602 = vpack.c.bf16 %v581, %v580
      %v603 = vpack.c.bf16 %v583, %v582
      %v604 = vpack.c.bf16 %v585, %v584
      %v605 = vpack.c.bf16 %v587, %v586
      %v606 = vpack.c.bf16 %v589, %v588
      %v607 = vpack.c.bf16 %v591, %v590
      %v624 = vunpack.c.l.b16 %v592
      %v625 = vunpack.c.h.b16 %v592
      %v626 = vunpack.c.l.b16 %v593
      %v627 = vunpack.c.h.b16 %v593
      %v628 = vunpack.c.l.b16 %v594
      %v629 = vunpack.c.h.b16 %v594
      %v630 = vunpack.c.l.b16 %v595
      %v631 = vunpack.c.h.b16 %v595
      %v632 = vunpack.c.l.b16 %v596
      %v633 = vunpack.c.h.b16 %v596
      %v634 = vunpack.c.l.b16 %v597
      %v635 = vunpack.c.h.b16 %v597
      %v636 = vunpack.c.l.b16 %v598
      %v637 = vunpack.c.h.b16 %v598
      %v638 = vunpack.c.l.b16 %v599
      %v639 = vunpack.c.h.b16 %v599
      %v640 = vunpack.c.l.b16 %v600
      %v641 = vunpack.c.h.b16 %v600
      %v642 = vunpack.c.l.b16 %v601
      %v643 = vunpack.c.h.b16 %v601
      %v644 = vunpack.c.l.b16 %v602
      %v645 = vunpack.c.h.b16 %v602
      %v646 = vunpack.c.l.b16 %v603
      %v647 = vunpack.c.h.b16 %v603
      %v648 = vunpack.c.l.b16 %v604
      %v649 = vunpack.c.h.b16 %v604
      %v650 = vunpack.c.l.b16 %v605
      %v651 = vunpack.c.h.b16 %v605
      %v652 = vunpack.c.l.b16 %v606
      %v653 = vunpack.c.h.b16 %v606
      %v654 = vunpack.c.l.b16 %v607
      %v655 = vunpack.c.h.b16 %v607
      %v656 = vpack.c.b16 %v624, %v624
      %v657 = vpack.c.b16 %v625, %v625
      %v658 = vpack.c.b16 %v626, %v626
      %v659 = vpack.c.b16 %v627, %v627
      %v660 = vpack.c.b16 %v628, %v628
      %v661 = vpack.c.b16 %v629, %v629
      %v662 = vpack.c.b16 %v630, %v630
      %v663 = vpack.c.b16 %v631, %v631
      %v664 = vpack.c.b16 %v632, %v632
      %v665 = vpack.c.b16 %v633, %v633
      %v666 = vpack.c.b16 %v634, %v634
      %v667 = vpack.c.b16 %v635, %v635
      %v668 = vpack.c.b16 %v636, %v636
      %v669 = vpack.c.b16 %v637, %v637
      %v670 = vpack.c.b16 %v638, %v638
      %v671 = vpack.c.b16 %v639, %v639
      %v672 = vpack.c.b16 %v640, %v640
      %v673 = vpack.c.b16 %v641, %v641
      %v674 = vpack.c.b16 %v642, %v642
      %v675 = vpack.c.b16 %v643, %v643
      %v676 = vpack.c.b16 %v644, %v644
      %v677 = vpack.c.b16 %v645, %v645
      %v678 = vpack.c.b16 %v646, %v646
      %v679 = vpack.c.b16 %v647, %v647
      %v680 = vpack.c.b16 %v648, %v648
      %v681 = vpack.c.b16 %v649, %v649
      %v682 = vpack.c.b16 %v650, %v650
      %v683 = vpack.c.b16 %v651, %v651
      %v684 = vpack.c.b16 %v652, %v652
      %v685 = vpack.c.b16 %v653, %v653
      %v686 = vpack.c.b16 %v654, %v654
      %v687 = vpack.c.b16 %v655, %v655
      %vm720 = vcmask 27648
      %721 = vst.msk [vmem:[%s223] sm:$0xf] %vm720, %v656
      %722 = vst.msk [vmem:[%s223 + $0x4] sm:$0xf] %vm720, %v657
      %723 = vst.msk [vmem:[%s223 + $0x8] sm:$0xf] %vm720, %v658
      %724 = vst.msk [vmem:[%s223 + $0xc] sm:$0xf] %vm720, %v659
      %725 = vst.msk [vmem:[%s223 + $0x10] sm:$0xf] %vm720, %v660
      %726 = vst.msk [vmem:[%s223 + $0x14] sm:$0xf] %vm720, %v661
      %727 = vst.msk [vmem:[%s223 + $0x18] sm:$0xf] %vm720, %v662
      %728 = vst.msk [vmem:[%s223 + $0x1c] sm:$0xf] %vm720, %v663
      %729 = vst.msk [vmem:[%s223 + $0x20] sm:$0xf] %vm720, %v664
      %730 = vst.msk [vmem:[%s223 + $0x24] sm:$0xf] %vm720, %v665
      %731 = vst.msk [vmem:[%s223 + $0x28] sm:$0xf] %vm720, %v666
      %732 = vst.msk [vmem:[%s223 + $0x2c] sm:$0xf] %vm720, %v667
      %733 = vst.msk [vmem:[%s223 + $0x30] sm:$0xf] %vm720, %v668
      %734 = vst.msk [vmem:[%s223 + $0x34] sm:$0xf] %vm720, %v669
      %735 = vst.msk [vmem:[%s223 + $0x38] sm:$0xf] %vm720, %v670
      %736 = vst.msk [vmem:[%s223 + $0x3c] sm:$0xf] %vm720, %v671
      %737 = vst.msk [vmem:[%s223 + $0x40] sm:$0xf] %vm720, %v672
      %738 = vst.msk [vmem:[%s223 + $0x44] sm:$0xf] %vm720, %v673
      %739 = vst.msk [vmem:[%s223 + $0x48] sm:$0xf] %vm720, %v674
      %740 = vst.msk [vmem:[%s223 + $0x4c] sm:$0xf] %vm720, %v675
      %741 = vst.msk [vmem:[%s223 + $0x50] sm:$0xf] %vm720, %v676
      %742 = vst.msk [vmem:[%s223 + $0x54] sm:$0xf] %vm720, %v677
      %743 = vst.msk [vmem:[%s223 + $0x58] sm:$0xf] %vm720, %v678
      %744 = vst.msk [vmem:[%s223 + $0x5c] sm:$0xf] %vm720, %v679
      %745 = vst.msk [vmem:[%s223 + $0x60] sm:$0xf] %vm720, %v680
      %746 = vst.msk [vmem:[%s223 + $0x64] sm:$0xf] %vm720, %v681
      %747 = vst.msk [vmem:[%s223 + $0x68] sm:$0xf] %vm720, %v682
      %748 = vst.msk [vmem:[%s223 + $0x6c] sm:$0xf] %vm720, %v683
      %749 = vst.msk [vmem:[%s223 + $0x70] sm:$0xf] %vm720, %v684
      %750 = vst.msk [vmem:[%s223 + $0x74] sm:$0xf] %vm720, %v685
      %751 = vst.msk [vmem:[%s223 + $0x78] sm:$0xf] %vm720, %v686
      %752 = vst.msk [vmem:[%s223 + $0x7c] sm:$0xf] %vm720, %v687
      %s753 = smul.u32 32, %s18
      %p754 = scmp.lt.s32.totalorder %s753, 63
      %s755 = scalar_select %p754, %s753, 63
      %p756 = scmp.lt.s32.totalorder %s19, 0
      %s757 = scalar_select %p756, %s19, 0
      %s758 = sadd.s32 %s757, %s755
      %s759 = smul.addr %s758, 4
      %s760 = scalar_lea.vmem %s3, %s759
      // Predicated region
      $region33: #{tpu_custom_call.1} parent=31 // pred_check
        %p761 = pneg %p124
      $region34: #{tpu_custom_call.1} parent=31 // pred_check_branch
        %763 = sbr.rel (%p761) target = $region36
      $region35: #{tpu_custom_call.1} parent=31 // pred_region
        %s764 = smul.u32 32, %s18
      $region36: #{tpu_custom_call.1} parent=31 // pred_fallthru
        _
    $region32: #{tpu_custom_call.1} parent=5 // pred_fallthru
      _
    %p765 = scmp.le.s32.totalorder 2, %s9
    // Predicated region
    $region37: #{tpu_custom_call.1} parent=5 // pred_check
      %p766 = pneg %p765
    $region38: #{tpu_custom_call.1} parent=5 // pred_check_branch
      %768 = sbr.rel (%p766) target = $region40
    $region39: #{tpu_custom_call.1} parent=5 // pred_region
      %s769 = ssub.s32 %s9, 2
      // Predicated region
      $region41: #{tpu_custom_call.1} parent=39 // pred_check
        %p770 = pneg %p130
      $region42: #{tpu_custom_call.1} parent=39 // pred_check_branch
        %772 = sbr.rel (%p770) target = $region44
      $region43: #{tpu_custom_call.1} parent=39 // pred_region
        %s773 = smul.u32 32, %s20
        %p774 = scmp.lt.s32.totalorder %s773, 63
        %s775 = scalar_select %p774, %s773, 63
        %p776 = scmp.lt.s32.totalorder %s21, 0
        %s777 = scalar_select %p776, %s21, 0
        %s778 = sadd.s32 %s777, %s775
        %s779 = smul.addr %s778, 4
        %s780 = scalar_lea.vmem %s3, %s779
      $region44: #{tpu_custom_call.1} parent=39 // pred_fallthru
        _
    $region40: #{tpu_custom_call.1} parent=5 // pred_fallthru
      _
  $region6: #{tpu_custom_call.1} parent=0 // loop_footer
    %s13 = sadd.s32 1, %s9
  $region7: #{tpu_custom_call.1} parent=0 // loop_footer_branch
    %8 = sbr.rel target = $region3
  $region8: #{tpu_custom_call.1} parent=0 // loop_exit
    _

</llo_original>
